<compile_context>
chip_gen: v7x
topology: tpu7x:2x2x1
jax: 0.10.0
libtpu: 0.0.40
codegen_flags: <defaults>
</compile_context>

<pallas_src>
import functools

import jax
import jax.numpy as jnp
from jax.experimental import pallas as pl
from jax.experimental.pallas import tpu as pltpu

LANE = 128  # TPU lane width; feature dims are zero-padded to this for lane-dense vregs


def mlp_kernel(x_ref, w1_ref, b1_ref, w2_ref, b2_ref, out_ref, *, n_out):
    # x_ref  : (TILE_B, n_in)  f32
    # w1_ref : (n_in, 128)     f32   (cols >= 10 are zero)
    # b1_ref : (1, 128)        f32   (cols >= 10 are zero)
    # w2_ref : (128, 128)      f32   (rows >= 10 / cols >= 8 are zero)
    # b2_ref : (1, 128)        f32   (cols >= 8 are zero)
    # out_ref: (TILE_B, 128)   f32   (cols >= n_out written as 0)
    x = x_ref[...]

    # hidden1 + ReLU.  K=4 contraction: MXU tiles are padded but the kernel is
    # HBM/overhead-bound at these widths, so jnp.dot is fine.
    h1 = jnp.dot(x, w1_ref[...], preferred_element_type=jnp.float32) + b1_ref[...]
    h1 = jnp.maximum(h1, 0.0)

    # hidden2 + ReLU (padded rows of w2 are zero, so padded h1 lanes contribute 0).
    h2 = jnp.dot(h1, w2_ref[...], preferred_element_type=jnp.float32) + b2_ref[...]
    h2 = jnp.maximum(h2, 0.0)

    # Numerically-stable softmax over the first n_out (valid) lanes only.
    col = jax.lax.broadcasted_iota(jnp.int32, h2.shape, dimension=1)
    valid = col < n_out
    h2_masked = jnp.where(valid, h2, jnp.float32(-1e30))
    m = jnp.max(h2_masked, axis=-1, keepdims=True)
    e = jnp.where(valid, jnp.exp(h2 - m), 0.0)
    d = jnp.sum(e, axis=-1, keepdims=True)          # (TILE_B, 1)
    r = pl.reciprocal(d, approx=True)               # EUP slot (effectively free)
    r = r * (2.0 - d * r)                           # one Newton step -> ~f32 accuracy
    out_ref[...] = e * r                            # full-lane (unmasked) store


def mlp_forward(x, w1, b1, w2, b2, *, tile_b=2048):
    """x: (B, n_in) f32; weights in [in, out] layout. Returns (B, 8) softmax probs."""
    B, n_in = x.shape
    h_mid = w1.shape[1]   # 10
    n_out = w2.shape[1]   # 8

    # Zero-pad feature dims to 128 lanes -> lane-dense activations/output in-kernel.
    w1p = jnp.zeros((n_in, LANE), jnp.float32).at[:, :h_mid].set(w1)
    b1p = jnp.zeros((1, LANE), jnp.float32).at[:, :h_mid].set(b1.reshape(1, -1))
    w2p = jnp.zeros((LANE, LANE), jnp.float32).at[:h_mid, :n_out].set(w2)
    b2p = jnp.zeros((1, LANE), jnp.float32).at[:, :n_out].set(b2.reshape(1, -1))

    # Batch tiling: big tiles amortize the ~0.35 us/step overhead; pad B to a
    # tile multiple (padded rows are harmless and sliced off below).
    if B <= tile_b:
        tb, b_pad = B, B                      # single full-extent tile
    else:
        tb = tile_b                           # must be a multiple of 8
        b_pad = pl.cdiv(B, tb) * tb
    x_p = x if b_pad == B else jnp.pad(x, ((0, b_pad - B), (0, 0)))

    out = pl.pallas_call(
        functools.partial(mlp_kernel, n_out=n_out),
        out_shape=jax.ShapeDtypeStruct((b_pad, LANE), jnp.float32),
        grid=(b_pad // tb,),
        in_specs=[
            pl.BlockSpec((tb, n_in), lambda i: (i, 0)),     # x tile
            pl.BlockSpec((n_in, LANE), lambda i: (0, 0)),   # w1 (resident)
            pl.BlockSpec((1, LANE), lambda i: (0, 0)),      # b1
            pl.BlockSpec((LANE, LANE), lambda i: (0, 0)),   # w2
            pl.BlockSpec((1, LANE), lambda i: (0, 0)),      # b2
        ],
        out_specs=pl.BlockSpec((tb, LANE), lambda i: (i, 0)),
        compiler_params=pltpu.CompilerParams(
            dimension_semantics=("parallel",),        # shard batch tiles across TCs (v7x)
            vmem_limit_bytes=48 * 1024 * 1024,        # headroom under v7x's 64 MiB VMEM
        ),
    )(x_p, w1p, b1p, w2p, b2p)

    return out[:B, :n_out]


def init_params(key, n_inputs):
    """Deterministic synthetic init mimicking the PyTorch module's shapes.

    hidden1: Linear(n_inputs, 10), kaiming_uniform (relu)
    hidden2: Linear(10, 8),        kaiming_uniform (relu)
    (hidden3 exists in __init__ but is unused in forward, so it is skipped.)
    Weights are returned transposed to [in, out] for x @ W.
    """
    k1, k2, k3, k4 = jax.random.split(key, 4)

    def kaiming_uniform(key, fan_in, shape):
        bound = jnp.sqrt(2.0) * jnp.sqrt(3.0 / fan_in)
        return jax.random.uniform(key, shape, jnp.float32, -bound, bound)

    def bias_uniform(key, fan_in, shape):
        bound = 1.0 / jnp.sqrt(fan_in)
        return jax.random.uniform(key, shape, jnp.float32, -bound, bound)

    w1 = kaiming_uniform(k1, n_inputs, (n_inputs, 10))   # [in, out]
    b1 = bias_uniform(k2, n_inputs, (1, 10))
    w2 = kaiming_uniform(k3, 10, (10, 8))                # [in, out]
    b2 = bias_uniform(k4, 10, (1, 8))
    return w1, b1, w2, b2


def reference_forward(x, w1, b1, w2, b2):
    h1 = jnp.maximum(x @ w1 + b1, 0.0)
    h2 = jnp.maximum(h1 @ w2 + b2, 0.0)
    return jax.nn.softmax(h2, axis=1)


if __name__ == "__main__":
    key = jax.random.PRNGKey(0)
    kx, kp = jax.random.split(key)

    batch = 60          # deliberately not a tile multiple -> exercises batch padding
    n_inputs = 4        # iris-style feature count implied by the tutorial module
    x = jax.random.normal(kx, (batch, n_inputs), jnp.float32)

    w1, b1, w2, b2 = init_params(kp, n_inputs)

    # Small tile here so the demo exercises a multi-step (4-step) tiled grid.
    out = mlp_forward(x, w1, b1, w2, b2, tile_b=16)
    out = jax.block_until_ready(out)

    ref = reference_forward(x, w1, b1, w2, b2)
    assert out.shape == (batch, 8)
    assert jnp.allclose(out, ref, atol=1e-4, rtol=1e-4), float(jnp.max(jnp.abs(out - ref)))
    # rows of a softmax sum to 1
    assert jnp.allclose(jnp.sum(out, axis=1), jnp.ones((batch,)), atol=1e-4)

    print("KERNEL_OK")
</pallas_src>

<mosaic_0001>
module attributes {stable_mosaic.version = 11 : i64} {
  func.func @mlp_kernel(%arg0: i32, %arg1: memref<16x4xf32, #tpu.memory_space<vmem>>, %arg2: memref<4x128xf32, #tpu.memory_space<vmem>>, %arg3: memref<1x128xf32, #tpu.memory_space<vmem>>, %arg4: memref<128x128xf32, #tpu.memory_space<vmem>>, %arg5: memref<1x128xf32, #tpu.memory_space<vmem>>, %arg6: memref<16x128xf32, #tpu.memory_space<vmem>>) attributes {dimension_semantics = [#tpu.dimension_semantics<parallel>], iteration_bounds = array<i64: 4>, scalar_prefetch = 0 : i64, scratch_operands = 0 : i64, tpu.core_type = #tpu.core_type<tc>, window_params = [{transform_indices = @transform_0, window_bounds = array<i64: 16, 4>}, {pipeline_mode = #tpu.pipeline_mode<synchronous>, transform_indices = @transform_1, window_bounds = array<i64: 4, 128>}, {pipeline_mode = #tpu.pipeline_mode<synchronous>, transform_indices = @transform_2, window_bounds = array<i64: 1, 128>}, {pipeline_mode = #tpu.pipeline_mode<synchronous>, transform_indices = @transform_3, window_bounds = array<i64: 128, 128>}, {pipeline_mode = #tpu.pipeline_mode<synchronous>, transform_indices = @transform_4, window_bounds = array<i64: 1, 128>}, {transform_indices = @transform_5, window_bounds = array<i64: 16, 128>}]} {
    %c0 = arith.constant 0 : index
    %c0_0 = arith.constant 0 : index
    %0 = vector.load %arg1[%c0, %c0_0] : memref<16x4xf32, #tpu.memory_space<vmem>>, vector<16x4xf32>
    %c0_1 = arith.constant 0 : index
    %c0_2 = arith.constant 0 : index
    %1 = vector.load %arg2[%c0_1, %c0_2] : memref<4x128xf32, #tpu.memory_space<vmem>>, vector<4x128xf32>
    %cst = arith.constant dense<0.000000e+00> : vector<16x128xf32>
    %2 = tpu.matmul %0, %1, %cst {dimension_numbers = #tpu.dot_dimension_numbers<[1], [0], [0], [1], [0, 0, 1, 1], [], []>} : vector<16x4xf32>, vector<4x128xf32>, vector<16x128xf32> -> vector<16x128xf32>
    %c0_3 = arith.constant 0 : index
    %c0_4 = arith.constant 0 : index
    %3 = vector.load %arg3[%c0_3, %c0_4] : memref<1x128xf32, #tpu.memory_space<vmem>>, vector<1x128xf32>
    %4 = vector.broadcast %3 : vector<1x128xf32> to vector<16x128xf32>
    %5 = arith.addf %2, %4 : vector<16x128xf32>
    %cst_5 = arith.constant 0.000000e+00 : f32
    %6 = vector.broadcast %cst_5 : f32 to vector<16x128xf32>
    %7 = arith.maximumf %5, %6 : vector<16x128xf32>
    %c0_6 = arith.constant 0 : index
    %c0_7 = arith.constant 0 : index
    %8 = vector.load %arg4[%c0_6, %c0_7] : memref<128x128xf32, #tpu.memory_space<vmem>>, vector<128x128xf32>
    %cst_8 = arith.constant dense<0.000000e+00> : vector<16x128xf32>
    %9 = tpu.matmul %7, %8, %cst_8 {dimension_numbers = #tpu.dot_dimension_numbers<[1], [0], [0], [1], [0, 0, 1, 1], [], []>} : vector<16x128xf32>, vector<128x128xf32>, vector<16x128xf32> -> vector<16x128xf32>
    %c0_9 = arith.constant 0 : index
    %c0_10 = arith.constant 0 : index
    %10 = vector.load %arg5[%c0_9, %c0_10] : memref<1x128xf32, #tpu.memory_space<vmem>>, vector<1x128xf32>
    %11 = vector.broadcast %10 : vector<1x128xf32> to vector<16x128xf32>
    %12 = arith.addf %9, %11 : vector<16x128xf32>
    %cst_11 = arith.constant 0.000000e+00 : f32
    %13 = vector.broadcast %cst_11 : f32 to vector<16x128xf32>
    %14 = arith.maximumf %12, %13 : vector<16x128xf32>
    %15 = tpu.iota {dimensions = array<i32: 1>} : vector<16x128xi32>
    %c8_i32 = arith.constant 8 : i32
    %16 = vector.broadcast %c8_i32 : i32 to vector<16x128xi32>
    %17 = arith.cmpi slt, %15, %16 : vector<16x128xi32>
    %cst_12 = arith.constant -1.000000e+30 : f32
    %18 = vector.broadcast %cst_12 : f32 to vector<16x128xf32>
    %19 = arith.select %17, %14, %18 : vector<16x128xi1>, vector<16x128xf32>
    %cst_13 = arith.constant dense<0xFF800000> : vector<16xf32>
    %20 = vector.multi_reduction <maximumf>, %19, %cst_13 [1] : vector<16x128xf32> to vector<16xf32>
    %21 = vector.shape_cast %20 : vector<16xf32> to vector<16x1xf32>
    %22 = vector.broadcast %21 : vector<16x1xf32> to vector<16x128xf32>
    %23 = arith.subf %14, %22 : vector<16x128xf32>
    %24 = math.exp %23 : vector<16x128xf32>
    %cst_14 = arith.constant 0.000000e+00 : f32
    %25 = vector.broadcast %cst_14 : f32 to vector<16x128xf32>
    %26 = arith.select %17, %24, %25 : vector<16x128xi1>, vector<16x128xf32>
    %cst_15 = arith.constant dense<0.000000e+00> : vector<16xf32>
    %27 = vector.multi_reduction <add>, %26, %cst_15 [1] : vector<16x128xf32> to vector<16xf32>
    %28 = vector.shape_cast %27 : vector<16xf32> to vector<16x1xf32>
    %29 = tpu.reciprocal %28 {approx = true} : vector<16x1xf32> -> vector<16x1xf32>
    %30 = arith.mulf %28, %29 : vector<16x1xf32>
    %cst_16 = arith.constant 2.000000e+00 : f32
    %31 = vector.broadcast %cst_16 : f32 to vector<16x1xf32>
    %32 = arith.subf %31, %30 : vector<16x1xf32>
    %33 = arith.mulf %29, %32 : vector<16x1xf32>
    %34 = vector.broadcast %33 : vector<16x1xf32> to vector<16x128xf32>
    %35 = arith.mulf %26, %34 : vector<16x128xf32>
    %c0_17 = arith.constant 0 : index
    %c0_18 = arith.constant 0 : index
    %36 = vector.load %arg6[%c0_17, %c0_18] : memref<16x128xf32, #tpu.memory_space<vmem>>, vector<16x128xf32>
    tpu.vector_store %arg6[%c0_17, %c0_18], %35 {strides = array<i32>} : memref<16x128xf32, #tpu.memory_space<vmem>>, vector<16x128xf32>,
    return
  }
  func.func @transform_0(%arg0: i32) -> (i32, i32) {
    %c0_i32 = arith.constant 0 : i32
    %c0_i32_0 = arith.constant 0 : i32
    return %arg0, %c0_i32 : i32, i32
  }
  func.func @transform_1(%arg0: i32) -> (i32, i32) {
    %c0_i32 = arith.constant 0 : i32
    %c0_i32_0 = arith.constant 0 : i32
    %c0_i32_1 = arith.constant 0 : i32
    return %c0_i32, %c0_i32_0 : i32, i32
  }
  func.func @transform_2(%arg0: i32) -> (i32, i32) {
    %c0_i32 = arith.constant 0 : i32
    %c0_i32_0 = arith.constant 0 : i32
    %c0_i32_1 = arith.constant 0 : i32
    return %c0_i32, %c0_i32_0 : i32, i32
  }
  func.func @transform_3(%arg0: i32) -> (i32, i32) {
    %c0_i32 = arith.constant 0 : i32
    %c0_i32_0 = arith.constant 0 : i32
    %c0_i32_1 = arith.constant 0 : i32
    return %c0_i32, %c0_i32_0 : i32, i32
  }
  func.func @transform_4(%arg0: i32) -> (i32, i32) {
    %c0_i32 = arith.constant 0 : i32
    %c0_i32_0 = arith.constant 0 : i32
    %c0_i32_1 = arith.constant 0 : i32
    return %c0_i32, %c0_i32_0 : i32, i32
  }
  func.func @transform_5(%arg0: i32) -> (i32, i32) {
    %c0_i32 = arith.constant 0 : i32
    %c0_i32_0 = arith.constant 0 : i32
    return %arg0, %c0_i32 : i32, i32
  }
}

</mosaic_0001>

<llo_original>
// kernel: tpu_custom_call.1
$region0: #{tpu_custom_call.1}
  #allocation0 [shape = 'u32[]', space=smem, size = 0x4, offset = 0x4, fixed_abs, tag = 'smem constant byte address 0x4 - core index']
  #allocation1 [shape = 'u32[144,128]{1,0:T(1,128)}', space=vmem, size = 0x12000, scoped, tag = 'internal scratch']
  %s0 = inlined_call_operand.vmem [shape: f32[64,4], index: 0, kind: input, shape index: {}]
  %s1 = inlined_call_operand.vmem [shape: f32[4,128], index: 1, kind: input, shape index: {}]
  %s2 = inlined_call_operand.vmem [shape: f32[1,128], index: 2, kind: input, shape index: {}]
  %s3 = inlined_call_operand.hbm [shape: f32[128,128], index: 3, kind: input, shape index: {}]
  %s4 = inlined_call_operand.vmem [shape: f32[1,128], index: 4, kind: input, shape index: {}]
  %s5 = inlined_call_operand.hbm [shape: f32[64,128], index: 5, kind: output, shape index: {}]
  %s6 = sld [smem:[#allocation0]]
  $region57: #{tpu_custom_call.1} parent=0
    _
  %s8 = ssub.s32 1, %s6
  %s9 = scalar_select 0, %s8, %s6
  $region1: #{tpu_custom_call.1} parent=0
    #allocation2 [shape = 'u8[65536]{0}', space=vmem, size = 0x10000, scoped, tag = 'input window, operand 3, single buffered']
    #allocation3 [shape = 's32[2]{0}', space=sflag, size = 0x8, scoped, tag = 'scoped memory for tpu_custom_call.1']
    #allocation4 [shape = 's32[2]{0}', space=sflag, size = 0x8, scoped, tag = 'scoped memory for tpu_custom_call.1']
    #allocation5 [shape = 'u8[16384]{0}', space=vmem, size = 0x4000, scoped, tag = 'output window, operand 0']
    %10 = vsyncpa [#allocation3], 0
    %11 = vsyncpa [#allocation4], 0
    %s12 = scalar_lea.sflag [#allocation4], 1
    %13 = vsyncpa %s12, 0
    loop: start=0, step=1, limit=6
    $region2: #{tpu_custom_call.1} parent=1 // loop_pre_header
      _
    $region3: #{tpu_custom_call.1} parent=1 // loop_header
      %s15 = sphi 0, %s19
      %p16 = scmp.ge.s32.totalorder %s15, 6
      %s25 = sphi 0, %s27
      %s28 = sphi 0, %s25
      %s29 = sphi 0, %s28
      %s45 = sphi 0, %s29
      %s49 = sphi 0, %s49
      %s51 = sphi 0, %s49
      %s52 = sphi 0, %s51
      %s66 = sphi 0, %s52
      %s70 = sphi 0, %s70
      %s72 = sphi 0, %s70
      %s73 = sphi 0, %s72
      %s87 = sphi 0, %s73
      %s91 = sphi 0, %s91
      %s93 = sphi 0, %s91
      %s94 = sphi 0, %s93
      %s108 = sphi 0, %s94
      %s112 = sphi 0, %s112
      %s114 = sphi 0, %s112
      %s115 = sphi 0, %s114
      %s129 = sphi 0, %s115
      %s135 = sphi 0, %s137
      %s138 = sphi 0, %s135
      %s139 = sphi 0, %s138
      %s155 = sphi 0, %s139
    $region4: #{tpu_custom_call.1} parent=1 // loop_header_branch
      %18 = sbr.rel (%p16) target = $region8
    $region5: #{tpu_custom_call.1} parent=1 // loop_body
      %s20 = ssub.s32 %s15, 1
      %s21 = ssub.s32 %s15, 2
      %s22 = sadd.s32 %s15, 1
      %s23 = ssub.s32 %s15, %s22
      %p24 = scmp.eq.s32.totalorder %s23, 0
      %s26 = sadd.s32 %s25, 1
      %s27 = scalar_select %p24, %s25, %s26
      %p30 = pneg %p24
      %p31 = scmp.eq.s32.totalorder %s15, 3
      %p32 = por %p30, %p31
      %p33 = scmp.ne.s32.totalorder %s25, %s28
      %p34 = scmp.eq.s32.totalorder %s15, 0
      %p35 = por %p33, %p34
      %p36 = scmp.ne.s32.totalorder %s25, %s28
      %p37 = scmp.eq.s32.totalorder %s20, 3
      %p38 = por %p36, %p37
      %p39 = scmp.ne.s32.totalorder %s28, %s29
      %p40 = scmp.eq.s32.totalorder %s20, 0
      %p41 = por %p39, %p40
      %p42 = scmp.ne.s32.totalorder %s28, %s29
      %p43 = scmp.eq.s32.totalorder %s21, 3
      %p44 = por %p42, %p43
      %p46 = scmp.ne.s32.totalorder %s29, %s45
      %p47 = scmp.eq.s32.totalorder %s21, 0
      %p48 = por %p46, %p47
      %s50 = sadd.s32 %s49, 1
      %p53 = scmp.eq.s32.totalorder %s15, 3
      %p54 = scmp.ne.s32.totalorder %s49, %s51
      %p55 = scmp.eq.s32.totalorder %s15, 0
      %p56 = por %p54, %p55
      %p57 = scmp.ne.s32.totalorder %s49, %s51
      %p58 = scmp.eq.s32.totalorder %s20, 3
      %p59 = por %p57, %p58
      %p60 = scmp.ne.s32.totalorder %s51, %s52
      %p61 = scmp.eq.s32.totalorder %s20, 0
      %p62 = por %p60, %p61
      %p63 = scmp.ne.s32.totalorder %s51, %s52
      %p64 = scmp.eq.s32.totalorder %s21, 3
      %p65 = por %p63, %p64
      %p67 = scmp.ne.s32.totalorder %s52, %s66
      %p68 = scmp.eq.s32.totalorder %s21, 0
      %p69 = por %p67, %p68
      %s71 = sadd.s32 %s70, 1
      %p74 = scmp.eq.s32.totalorder %s15, 3
      %p75 = scmp.ne.s32.totalorder %s70, %s72
      %p76 = scmp.eq.s32.totalorder %s15, 0
      %p77 = por %p75, %p76
      %p78 = scmp.ne.s32.totalorder %s70, %s72
      %p79 = scmp.eq.s32.totalorder %s20, 3
      %p80 = por %p78, %p79
      %p81 = scmp.ne.s32.totalorder %s72, %s73
      %p82 = scmp.eq.s32.totalorder %s20, 0
      %p83 = por %p81, %p82
      %p84 = scmp.ne.s32.totalorder %s72, %s73
      %p85 = scmp.eq.s32.totalorder %s21, 3
      %p86 = por %p84, %p85
      %p88 = scmp.ne.s32.totalorder %s73, %s87
      %p89 = scmp.eq.s32.totalorder %s21, 0
      %p90 = por %p88, %p89
      %s92 = sadd.s32 %s91, 1
      %p95 = scmp.eq.s32.totalorder %s15, 3
      %p96 = scmp.ne.s32.totalorder %s91, %s93
      %p97 = scmp.eq.s32.totalorder %s15, 0
      %p98 = por %p96, %p97
      %p99 = scmp.ne.s32.totalorder %s91, %s93
      %p100 = scmp.eq.s32.totalorder %s20, 3
      %p101 = por %p99, %p100
      %p102 = scmp.ne.s32.totalorder %s93, %s94
      %p103 = scmp.eq.s32.totalorder %s20, 0
      %p104 = por %p102, %p103
      %p105 = scmp.ne.s32.totalorder %s93, %s94
      %p106 = scmp.eq.s32.totalorder %s21, 3
      %p107 = por %p105, %p106
      %p109 = scmp.ne.s32.totalorder %s94, %s108
      %p110 = scmp.eq.s32.totalorder %s21, 0
      %p111 = por %p109, %p110
      %s113 = sadd.s32 %s112, 1
      %p116 = scmp.eq.s32.totalorder %s15, 3
      %p117 = scmp.ne.s32.totalorder %s112, %s114
      %p118 = scmp.eq.s32.totalorder %s15, 0
      %p119 = por %p117, %p118
      %p120 = scmp.ne.s32.totalorder %s112, %s114
      %p121 = scmp.eq.s32.totalorder %s20, 3
      %p122 = por %p120, %p121
      %p123 = scmp.ne.s32.totalorder %s114, %s115
      %p124 = scmp.eq.s32.totalorder %s20, 0
      %p125 = por %p123, %p124
      %p126 = scmp.ne.s32.totalorder %s114, %s115
      %p127 = scmp.eq.s32.totalorder %s21, 3
      %p128 = por %p126, %p127
      %p130 = scmp.ne.s32.totalorder %s115, %s129
      %p131 = scmp.eq.s32.totalorder %s21, 0
      %p132 = por %p130, %p131
      %s133 = ssub.s32 %s15, %s22
      %p134 = scmp.eq.s32.totalorder %s133, 0
      %s136 = sadd.s32 %s135, 1
      %s137 = scalar_select %p134, %s135, %s136
      %p140 = pneg %p134
      %p141 = scmp.eq.s32.totalorder %s15, 3
      %p142 = por %p140, %p141
      %p143 = scmp.ne.s32.totalorder %s135, %s138
      %p144 = scmp.eq.s32.totalorder %s15, 0
      %p145 = por %p143, %p144
      %p146 = scmp.ne.s32.totalorder %s135, %s138
      %p147 = scmp.eq.s32.totalorder %s20, 3
      %p148 = por %p146, %p147
      %p149 = scmp.ne.s32.totalorder %s138, %s139
      %p150 = scmp.eq.s32.totalorder %s20, 0
      %p151 = por %p149, %p150
      %p152 = scmp.ne.s32.totalorder %s138, %s139
      %p153 = scmp.eq.s32.totalorder %s21, 3
      %p154 = por %p152, %p153
      %p156 = scmp.ne.s32.totalorder %s139, %s155
      %p157 = scmp.eq.s32.totalorder %s21, 0
      %p158 = por %p156, %p157
      %p159 = scmp.le.s32.totalorder 1, %s15
      %p160 = scmp.lt.s32.totalorder %s15, 5
      %p161 = pnand %p159, %p160
      %p162 = pneg %p161
      // Predicated region
      $region9: #{tpu_custom_call.1} parent=5 // pred_check
        _
      $region10: #{tpu_custom_call.1} parent=5 // pred_check_branch
        %164 = sbr.rel (%p161) target = $region12
      $region11: #{tpu_custom_call.1} parent=5 // pred_region
        %s165 = ssub.s32 %s15, 1
        // Predicated region
        $region13: #{tpu_custom_call.1} parent=11 // pred_check
          %p166 = pneg %p62
        $region14: #{tpu_custom_call.1} parent=11 // pred_check_branch
          %168 = sbr.rel (%p166) target = $region16
        $region15: #{tpu_custom_call.1} parent=11 // pred_region
          _
        $region16: #{tpu_custom_call.1} parent=11 // pred_fallthru
          _
        // Predicated region
        $region17: #{tpu_custom_call.1} parent=11 // pred_check
          %p169 = pneg %p83
        $region18: #{tpu_custom_call.1} parent=11 // pred_check_branch
          %171 = sbr.rel (%p169) target = $region20
        $region19: #{tpu_custom_call.1} parent=11 // pred_region
          _
        $region20: #{tpu_custom_call.1} parent=11 // pred_fallthru
          _
        // Predicated region
        $region21: #{tpu_custom_call.1} parent=11 // pred_check
          %p172 = pneg %p104
        $region22: #{tpu_custom_call.1} parent=11 // pred_check_branch
          %174 = sbr.rel (%p172) target = $region24
        $region23: #{tpu_custom_call.1} parent=11 // pred_region
          %s176 = ssub.s32 2048, 2048
          %177 = vsyncadd [#allocation3], %s176
          %s178 = sshll.u32 [#allocation2], 4
          %s179 = int_to_ptr.vmem [resolvable:$true] %s178
          %184 = dma.hbm_to_vmem [thread:$0]  %s3, 2048, %s179, [#allocation3], 128, 128, 8
        $region24: #{tpu_custom_call.1} parent=11 // pred_fallthru
          _
        // Predicated region
        $region25: #{tpu_custom_call.1} parent=11 // pred_check
          %p185 = pneg %p125
        $region26: #{tpu_custom_call.1} parent=11 // pred_check_branch
          %187 = sbr.rel (%p185) target = $region28
        $region27: #{tpu_custom_call.1} parent=11 // pred_region
          _
        $region28: #{tpu_custom_call.1} parent=11 // pred_fallthru
          _
      $region12: #{tpu_custom_call.1} parent=5 // pred_fallthru
        _
      %p188 = scmp.lt.s32.totalorder %s15, 4
      // Predicated region
      $region29: #{tpu_custom_call.1} parent=5 // pred_check
        %p189 = pneg %p188
      $region30: #{tpu_custom_call.1} parent=5 // pred_check_branch
        %191 = sbr.rel (%p189) target = $region32
      $region31: #{tpu_custom_call.1} parent=5 // pred_region
        // Predicated region
        $region33: #{tpu_custom_call.1} parent=31 // pred_check
          %p192 = pneg %p35
        $region34: #{tpu_custom_call.1} parent=31 // pred_check_branch
          %194 = sbr.rel (%p192) target = $region36
        $region35: #{tpu_custom_call.1} parent=31 // pred_region
          %s195 = smul.u32 2, %s15
          %p196 = scmp.lt.s32.totalorder %s195, 7
          %s197 = scalar_select %p196, %s195, 7
          %s198 = smul.addr %s197, 8
          %s199 = scalar_lea.vmem %s0, %s198
          %s200 = smul.u32 2, %s15
        $region36: #{tpu_custom_call.1} parent=31 // pred_fallthru
          _
      $region32: #{tpu_custom_call.1} parent=5 // pred_fallthru
        _
      %p201 = scmp.le.s32.totalorder 1, %s15
      %p202 = scmp.lt.s32.totalorder %s15, 5
      %p203 = pnand %p201, %p202
      %p204 = pneg %p203
      // Predicated region
      $region37: #{tpu_custom_call.1} parent=5 // pred_check
        _
      $region38: #{tpu_custom_call.1} parent=5 // pred_check_branch
        %206 = sbr.rel (%p203) target = $region40
      $region39: #{tpu_custom_call.1} parent=5 // pred_region
        %s207 = ssub.s32 %s15, 1
        // Predicated region
        $region41: #{tpu_custom_call.1} parent=39 // pred_check
          %p208 = pneg %p104
        $region42: #{tpu_custom_call.1} parent=39 // pred_check_branch
          %210 = sbr.rel (%p208) target = $region44
        $region43: #{tpu_custom_call.1} parent=39 // pred_region
          %211 = dma.done [#allocation3], 2048
        $region44: #{tpu_custom_call.1} parent=39 // pred_fallthru
          _
        %s212 = smul.u32 2, %s20
        %p213 = scmp.lt.s32.totalorder %s212, 7
        %s214 = scalar_select %p213, %s212, 7
        %s215 = smul.addr %s214, 8
        %s216 = scalar_lea.vmem %s0, %s215
        %p217 = pneg %p41
        %p218 = pneg %p38
        %p219 = pneg %p62
        %p220 = pneg %p59
        %p221 = pneg %p83
        %p222 = pneg %p80
        %p223 = pneg %p104
        %p224 = pneg %p101
        %p225 = pneg %p125
        %p226 = pneg %p122
        %p227 = pneg %p151
        %p228 = pneg %p148
        %s229 = sand.u32 %s138, 1
        %s230 = scalar_lea.sflag [#allocation4], %s229
        %s231 = sand.u32 %s138, 1
        %s232 = smul.addr %s231, 16
        %s233 = scalar_lea.vmem [#allocation5], %s232
        %s234 = smul.u32 2, %s20
        %p235 = scmp.lt.s32.totalorder %s234, 7
        %s236 = scalar_select %p235, %s234, 7
        %s237 = smul.addr %s236, 8
        %s238 = scalar_lea.vmem %s0, %s237
        %s239 = smul.u32 2, %s20
        %s240 = smul.u32 2, %s20
        %v241 = vld [vmem:[%s238] sm:$0xff]
        %v242 = vld [vmem:[%s238 + $0x8] sm:$0xff]
        %v243 = vld [vmem:[%s1] sm:$0xf]
        %v244 = vld [vmem:[%s2] sm:$0x1]
        %v246 = vlaneseq
        %v247 = vshrl.u32 %v246, 7
        %v248 = vsub.s32 0, %v247
        %v249 = vrot.slane %v244, %v248
        %vm251 = vcmask 31744
        %v253 = vsel %vm251, %v241, 0
        %v256 = vsel %vm251, %v242, 0
        %vm258 = vcmask 1043456
        %v260 = vsel %vm258, %v243, 0
        %262 = vmatprep.subr.mxu0 0.0
        %263 = vmatpush1.msra.mxu0 %v260
        %264 = vmatprep.subr.mxu0 0.0
        %265 = vmatpush1.msra.mxu0 0.0
        %266 = vmatprep.subr.mxu0 0.0
        %267 = vmatpush1.msra.mxu0 0.0
        %268 = vmatprep.subr.mxu0 0.0
        %269 = vmatpush1.msra.mxu0 0.0
        %270 = vmatprep.subr.mxu0 0.0
        %271 = vmatpush1.msra.mxu0 0.0
        %272 = vmatprep.subr.mxu0 0.0
        %273 = vmatpush1.msra.mxu0 0.0
        %274 = vmatprep.subr.mxu0 0.0
        %275 = vmatpush1.msra.mxu0 0.0
        %276 = vmatprep.subr.mxu0 0.0
        %277 = vmatpush1.msra.mxu0 0.0
        %278 = vmatprep.subr.mxu0 0.0
        %279 = vmatpush1.msra.mxu0 0.0
        %280 = vmatprep.subr.mxu0 0.0
        %281 = vmatpush1.msra.mxu0 0.0
        %282 = vmatprep.subr.mxu0 0.0
        %283 = vmatpush1.msra.mxu0 0.0
        %284 = vmatprep.subr.mxu0 0.0
        %285 = vmatpush1.msra.mxu0 0.0
        %286 = vmatprep.subr.mxu0 0.0
        %287 = vmatpush1.msra.mxu0 0.0
        %288 = vmatprep.subr.mxu0 0.0
        %289 = vmatpush1.msra.mxu0 0.0
        %290 = vmatprep.subr.mxu0 0.0
        %291 = vmatpush1.msra.mxu0 0.0
        %292 = vmatprep.subr.mxu0 0.0
        %293 = vmatpush1.msra.mxu0 0.0
        %294 = vmatprep.subr.mxu0 0.0
        %295 = vmatpush1.msra.mxu0 0.0
        %296 = vmatprep.subr.mxu0 0.0
        %297 = vmatpush1.msra.mxu0 0.0
        %298 = vmatprep.subr.mxu0 0.0
        %299 = vmatpush1.msra.mxu0 0.0
        %300 = vmatprep.subr.mxu0 0.0
        %301 = vmatpush1.msra.mxu0 0.0
        %302 = vmatprep.subr.mxu0 0.0
        %303 = vmatpush1.msra.mxu0 0.0
        %304 = vmatprep.subr.mxu0 0.0
        %305 = vmatpush1.msra.mxu0 0.0
        %306 = vmatprep.subr.mxu0 0.0
        %307 = vmatpush1.msra.mxu0 0.0
        %308 = vmatprep.subr.mxu0 0.0
        %309 = vmatpush1.msra.mxu0 0.0
        %310 = vmatprep.subr.mxu0 0.0
        %311 = vmatpush1.msra.mxu0 0.0
        %312 = vmatprep.subr.mxu0 0.0
        %313 = vmatpush1.msra.mxu0 0.0
        %314 = vmatprep.subr.mxu0 0.0
        %315 = vmatpush1.msra.mxu0 0.0
        %316 = vmatprep.subr.mxu0 0.0
        %317 = vmatpush1.msra.mxu0 0.0
        %318 = vmatprep.subr.mxu0 0.0
        %319 = vmatpush1.msra.mxu0 0.0
        %320 = vmatprep.subr.mxu0 0.0
        %321 = vmatpush1.msra.mxu0 0.0
        %322 = vmatprep.subr.mxu0 0.0
        %323 = vmatpush1.msra.mxu0 0.0
        %324 = vmatprep.subr.mxu0 0.0
        %325 = vmatpush1.msra.mxu0 0.0
        %326 = vmatprep.mubr.f32.mxu0 0.0
        %327 = vmatmul.mubr.f32.gmra.mrb[0].mxu0 %v253
        %v328 = vpop.f32.mrb[0].mxu0
        %v329 = vadd.f32 %v249, %v328
        %v330 = vpop.f32.mrb[0].mxu0
        %331 = vmatprep.mubr.f32.mxu0 0.0
        %332 = vmatmul.mubr.f32.gmra.mrb[0].mxu0 %v256
        %v333 = vpop.f32.mrb[0].mxu0
        %v334 = vadd.f32 %v249, %v333
        %v335 = vpop.f32.mrb[0].mxu0
        %336 = vdwg.mxu0
        %v337 = vmax.f32 %v329, 0.0
        %v338 = vmax.f32 %v334, 0.0
        %v339 = vld [vmem:[#allocation2] sm:$0xff]
        %v340 = vld [vmem:[#allocation2 + $0x8] sm:$0xff]
        %v341 = vld [vmem:[#allocation2 + $0x10] sm:$0xff]
        %v342 = vld [vmem:[#allocation2 + $0x18] sm:$0xff]
        %v343 = vld [vmem:[#allocation2 + $0x20] sm:$0xff]
        %v344 = vld [vmem:[#allocation2 + $0x28] sm:$0xff]
        %v345 = vld [vmem:[#allocation2 + $0x30] sm:$0xff]
        %v346 = vld [vmem:[#allocation2 + $0x38] sm:$0xff]
        %v347 = vld [vmem:[#allocation2 + $0x40] sm:$0xff]
        %v348 = vld [vmem:[#allocation2 + $0x48] sm:$0xff]
        %v349 = vld [vmem:[#allocation2 + $0x50] sm:$0xff]
        %v350 = vld [vmem:[#allocation2 + $0x58] sm:$0xff]
        %v351 = vld [vmem:[#allocation2 + $0x60] sm:$0xff]
        %v352 = vld [vmem:[#allocation2 + $0x68] sm:$0xff]
        %v353 = vld [vmem:[#allocation2 + $0x70] sm:$0xff]
        %v354 = vld [vmem:[#allocation2 + $0x78] sm:$0xff]
        %v355 = vld [vmem:[%s4] sm:$0x1]
        %v357 = vlaneseq
        %v358 = vshrl.u32 %v357, 7
        %v359 = vsub.s32 0, %v358
        %v360 = vrot.slane %v355, %v359
        %362 = vmatprep.subr.mxu0 0.0
        %363 = vmatpush1.msra.mxu0 %v339
        %364 = vmatprep.subr.mxu0 0.0
        %365 = vmatpush1.msra.mxu0 %v340
        %366 = vmatprep.subr.mxu0 0.0
        %367 = vmatpush1.msra.mxu0 %v341
        %368 = vmatprep.subr.mxu0 0.0
        %369 = vmatpush1.msra.mxu0 %v342
        %370 = vmatprep.subr.mxu0 0.0
        %371 = vmatpush1.msra.mxu0 %v343
        %372 = vmatprep.subr.mxu0 0.0
        %373 = vmatpush1.msra.mxu0 %v344
        %374 = vmatprep.subr.mxu0 0.0
        %375 = vmatpush1.msra.mxu0 %v345
        %376 = vmatprep.subr.mxu0 0.0
        %377 = vmatpush1.msra.mxu0 %v346
        %378 = vmatprep.subr.mxu0 0.0
        %379 = vmatpush1.msra.mxu0 %v347
        %380 = vmatprep.subr.mxu0 0.0
        %381 = vmatpush1.msra.mxu0 %v348
        %382 = vmatprep.subr.mxu0 0.0
        %383 = vmatpush1.msra.mxu0 %v349
        %384 = vmatprep.subr.mxu0 0.0
        %385 = vmatpush1.msra.mxu0 %v350
        %386 = vmatprep.subr.mxu0 0.0
        %387 = vmatpush1.msra.mxu0 %v351
        %388 = vmatprep.subr.mxu0 0.0
        %389 = vmatpush1.msra.mxu0 %v352
        %390 = vmatprep.subr.mxu0 0.0
        %391 = vmatpush1.msra.mxu0 %v353
        %392 = vmatprep.subr.mxu0 0.0
        %393 = vmatpush1.msra.mxu0 %v354
        %394 = vmatprep.subr.mxu0 0.0
        %395 = vmatpush1.msra.mxu0 0.0
        %396 = vmatprep.subr.mxu0 0.0
        %397 = vmatpush1.msra.mxu0 0.0
        %398 = vmatprep.subr.mxu0 0.0
        %399 = vmatpush1.msra.mxu0 0.0
        %400 = vmatprep.subr.mxu0 0.0
        %401 = vmatpush1.msra.mxu0 0.0
        %402 = vmatprep.subr.mxu0 0.0
        %403 = vmatpush1.msra.mxu0 0.0
        %404 = vmatprep.subr.mxu0 0.0
        %405 = vmatpush1.msra.mxu0 0.0
        %406 = vmatprep.subr.mxu0 0.0
        %407 = vmatpush1.msra.mxu0 0.0
        %408 = vmatprep.subr.mxu0 0.0
        %409 = vmatpush1.msra.mxu0 0.0
        %410 = vmatprep.subr.mxu0 0.0
        %411 = vmatpush1.msra.mxu0 0.0
        %412 = vmatprep.subr.mxu0 0.0
        %413 = vmatpush1.msra.mxu0 0.0
        %414 = vmatprep.subr.mxu0 0.0
        %415 = vmatpush1.msra.mxu0 0.0
        %416 = vmatprep.subr.mxu0 0.0
        %417 = vmatpush1.msra.mxu0 0.0
        %418 = vmatprep.subr.mxu0 0.0
        %419 = vmatpush1.msra.mxu0 0.0
        %420 = vmatprep.subr.mxu0 0.0
        %421 = vmatpush1.msra.mxu0 0.0
        %422 = vmatprep.subr.mxu0 0.0
        %423 = vmatpush1.msra.mxu0 0.0
        %424 = vmatprep.subr.mxu0 0.0
        %425 = vmatpush1.msra.mxu0 0.0
        %426 = vmatprep.mubr.f32.mxu0 0.0
        %427 = vmatmul.mubr.f32.gmra.mrb[0].mxu0 %v337
        %v428 = vpop.f32.mrb[0].mxu0
        %v429 = vadd.f32 %v360, %v428
        %v430 = vpop.f32.mrb[0].mxu0
        %431 = vmatprep.mubr.f32.mxu0 0.0
        %432 = vmatmul.mubr.f32.gmra.mrb[0].mxu0 %v338
        %v433 = vpop.f32.mrb[0].mxu0
        %v434 = vadd.f32 %v360, %v433
        %v435 = vpop.f32.mrb[0].mxu0
        %436 = vdwg.mxu0
        %v437 = vmax.f32 %v429, 0.0
        %v438 = vmax.f32 %v434, 0.0
        %v439 = vlaneseq
        %v440 = vand.u32 %v439, 127
        %vm441 = vcmp.lt.s32.totalorder %v440, 8
        %v442 = vsel %vm441, %v437, -1e+30
        %v443 = vsel %vm441, %v438, -1e+30
        %444 = vmax.xlane.f32.xlu0 %v442
        %v445 = vpop.xlane.xlu0 %444
        %446 = vmax.xlane.f32.xlu0 %v443
        %v447 = vpop.xlane.xlu0 %446
        %v448 = vsub.f32 %v437, %v445
        %v449 = vsub.f32 %v438, %v447
        %v450 = vmul.f32 %v448, 1.442695
        %v451 = vpow.pop %v450
        %v452 = vmul.f32 %v449, 1.442695
        %v453 = vpow.pop %v452
        %v454 = vsel %vm441, %v451, 0.0
        %v455 = vsel %vm441, %v453, 0.0
        %456 = vadd.xlane.f32.xlu0 %v454
        %v457 = vpop.xlane.xlu0 %456
        %458 = vadd.xlane.f32.xlu0 %v455
        %v459 = vpop.xlane.xlu0 %458
        %v460 = vrcp.pop %v457
        %v461 = vrcp.pop %v459
        %v462 = vmul.f32 %v457, %v460
        %v463 = vmul.f32 %v459, %v461
        %v464 = vsub.f32 2.0, %v462
        %v465 = vsub.f32 2.0, %v463
        %v466 = vmul.f32 %v460, %v464
        %v467 = vmul.f32 %v461, %v465
        %v468 = vmul.f32 %v454, %v466
        %v469 = vmul.f32 %v455, %v467
        %470 = vst [vmem:[%s233] sm:$0xff] %v468
        %471 = vst [vmem:[%s233 + $0x8] sm:$0xff] %v469
        %s472 = sand.u32 %s138, 1
        %s473 = scalar_lea.sflag [#allocation4], %s472
        %s474 = sand.u32 %s138, 1
        %s475 = smul.addr %s474, 16
        %s476 = scalar_lea.vmem [#allocation5], %s475
        // Predicated region
        $region45: #{tpu_custom_call.1} parent=39 // pred_check
          %p477 = pneg %p148
        $region46: #{tpu_custom_call.1} parent=39 // pred_check_branch
          %479 = sbr.rel (%p477) target = $region48
        $region47: #{tpu_custom_call.1} parent=39 // pred_region
          %s480 = smul.u32 2, %s20
          %s482 = ssub.s32 256, 256
          %483 = vsyncadd %s473, %s482
          %s484 = smul.addr %s480, 128
          %s485 = scalar_lea.hbm %s5, %s484
          %s486 = sshll.u32 %s476, 4
          %s487 = int_to_ptr.vmem [resolvable:$true] %s486
          %492 = dma.vmem_to_hbm [thread:$0]  %s487, 256, %s485, %s473, 128, 128, 8
        $region48: #{tpu_custom_call.1} parent=39 // pred_fallthru
          _
      $region40: #{tpu_custom_call.1} parent=5 // pred_fallthru
        _
      %p493 = scmp.le.s32.totalorder 2, %s15
      // Predicated region
      $region49: #{tpu_custom_call.1} parent=5 // pred_check
        %p494 = pneg %p493
      $region50: #{tpu_custom_call.1} parent=5 // pred_check_branch
        %496 = sbr.rel (%p494) target = $region52
      $region51: #{tpu_custom_call.1} parent=5 // pred_region
        %s497 = ssub.s32 %s15, 2
        // Predicated region
        $region53: #{tpu_custom_call.1} parent=51 // pred_check
          %p498 = pneg %p154
        $region54: #{tpu_custom_call.1} parent=51 // pred_check_branch
          %500 = sbr.rel (%p498) target = $region56
        $region55: #{tpu_custom_call.1} parent=51 // pred_region
          %s501 = sand.u32 %s139, 1
          %s502 = scalar_lea.sflag [#allocation4], %s501
          %s503 = sand.u32 %s139, 1
          %s504 = smul.addr %s503, 16
          %s505 = scalar_lea.vmem [#allocation5], %s504
          %506 = dma.done %s502, 256
        $region56: #{tpu_custom_call.1} parent=51 // pred_fallthru
          _
      $region52: #{tpu_custom_call.1} parent=5 // pred_fallthru
        _
    $region6: #{tpu_custom_call.1} parent=1 // loop_footer
      %s19 = sadd.s32 1, %s15
    $region7: #{tpu_custom_call.1} parent=1 // loop_footer_branch
      %14 = sbr.rel target = $region3
    $region8: #{tpu_custom_call.1} parent=1 // loop_exit
      _
    %507 = vsyncpa [#allocation3], 1
    %s508 = scalar_lea.sflag [#allocation3], 1
    %509 = vsyncpa %s508, 1
    %510 = vsyncpa [#allocation4], 1
    %s511 = scalar_lea.sflag [#allocation4], 1
    %512 = vsyncpa %s511, 1

</llo_original>
